<compile_context>
chip_gen: v6e
topology: v6e:2x2x1
jax: 0.10.0
libtpu: 0.0.40
codegen_flags: <defaults>
</compile_context>

<pallas_src>
import jax
import jax.numpy as jnp
from jax import lax
from jax.experimental import pallas as pl
from jax.experimental.pallas import tpu as pltpu


# ----------------------------- helpers --------------------------------------

def _pick_tile(dim, preferred):
    """Largest tile <= preferred that evenly divides dim."""
    t = min(dim, preferred)
    while dim % t != 0:
        t //= 2
    return max(t, 1)


def _round_up(x, m):
    return ((x + m - 1) // m) * m


def _vmem_budget(estimate_bytes):
    """Explicit scoped-VMEM limit: 2x estimate, clamped to [16 MiB, 48 MiB]."""
    return int(min(max(2 * estimate_bytes, 16 * 1024 * 1024), 48 * 1024 * 1024))


# ----------------------------- Pallas kernels ------------------------------

def _enc_attn_kernel(len_ref, speech_ref, uttemb_ref, tok_ref, we_ref, be_ref,
                     h_ref, m_sc, l_sc, acc_sc):
    # len_ref:    (B,)   int32 SMEM (scalar prefetch)
    # speech_ref: (1, tt, F) bf16    uttemb_ref: (1, 1, H) bf16
    # tok_ref:    (1, L, H)  bf16    we_ref: (F, H) bf16   be_ref: (1, H) f32
    # h_ref:      (1, L, H)  bf16  (tok + attention context)
    # scratch:    m_sc (L,1) f32, l_sc (L,1) f32, acc_sc (L,H) f32
    b = pl.program_id(0)
    k = pl.program_id(1)
    nt = pl.num_programs(1)
    tt = speech_ref.shape[1]
    hdim = we_ref.shape[1]
    length = len_ref[b]

    @pl.when(k == 0)
    def _():
        m_sc[...] = jnp.full_like(m_sc, -jnp.inf)
        l_sc[...] = jnp.zeros_like(l_sc)
        acc_sc[...] = jnp.zeros_like(acc_sc)

    # Skip fully-padded T chunks entirely.
    @pl.when(k * tt < length)
    def _():
        x = speech_ref[0]                      # (tt, F) bf16
        u = uttemb_ref[0]                      # (1, H)  bf16
        t = tok_ref[0]                         # (L, H)  bf16

        # --- encoder chunk (fused) ---
        enc = jnp.dot(x, we_ref[...], preferred_element_type=jnp.float32)   # (tt, H)
        enc = jnp.maximum(enc + be_ref[...] + u.astype(jnp.float32), 0.0)
        enc = enc.astype(jnp.bfloat16)

        # In-kernel lane mask from prefetched length (no (B,T) HBM stream).
        frame = k * tt + lax.broadcasted_iota(jnp.int32, (1, tt), 1)         # (1, tt)
        valid = frame < length

        # --- attention (online softmax over T chunks) ---
        # Contract last dims directly (no enc.T relayout); scale once in f32.
        scores = lax.dot_general(t, enc, (((1,), (1,)), ((), ())),
                                 preferred_element_type=jnp.float32)         # (L, tt)
        scores = scores * (1.0 / (hdim ** 0.5))
        scores = jnp.where(valid, scores, -1e30)

        m_new = jnp.maximum(m_sc[...], jnp.max(scores, axis=-1, keepdims=True))
        alpha = jnp.exp(m_sc[...] - m_new)
        p = jnp.exp(scores - m_new)
        l_sc[...] = alpha * l_sc[...] + jnp.sum(p, axis=-1, keepdims=True)
        acc_sc[...] = alpha * acc_sc[...] + jnp.dot(
            p.astype(jnp.bfloat16), enc, preferred_element_type=jnp.float32)
        m_sc[...] = m_new

    @pl.when(k == nt - 1)
    def _():
        t = tok_ref[0]
        # Guard against a fully-masked utterance (l == 0) -> zero context.
        inv = pl.reciprocal(jnp.maximum(l_sc[...], 1e-30), approx=True)
        h_ref[0] = (t.astype(jnp.float32) + acc_sc[...] * inv).astype(h_ref.dtype)


def _proj_kernel(h_ref, wo_ref, bo_ref, out_ref):
    # h_ref: (tm, H) bf16, wo_ref: (H, tv) bf16, bo_ref: (1, tv) f32
    out_ref[...] = (
        jnp.dot(h_ref[...], wo_ref[...], preferred_element_type=jnp.float32)
        + bo_ref[...]
    ).astype(out_ref.dtype)


# ----------------------------- wrappers -------------------------------------

def fused_encoder_attention(speech, utt_emb, lengths, tok_emb, w_enc, b_enc,
                            tile_t=512):
    B, T, F = speech.shape
    H = w_enc.shape[1]
    L = tok_emb.shape[1]
    tt = _pick_tile(T, tile_t)                 # T assumed multiple of 8
    nt = T // tt
    utt3 = utt_emb.reshape(B, 1, H)

    flops = 2 * B * (T * F * H + 2 * L * T * H)
    bytes_accessed = (speech.size * 2 + utt3.size * 2 + lengths.size * 4
                      + tok_emb.size * 2 + w_enc.size * 2 + b_enc.size * 4
                      + B * L * H * 2)
    vmem_est = (2 * tt * F * 2                 # speech chunk, double-buffered
                + 2 * H * 2 + 4 * L * H * 2    # utt + tok + out blocks
                + F * H * 2 + H * 4            # resident weights / bias
                + L * H * 4 + 2 * L * 4)       # online-softmax scratch

    return pl.pallas_call(
        _enc_attn_kernel,
        out_shape=jax.ShapeDtypeStruct((B, L, H), jnp.bfloat16),
        grid_spec=pltpu.PrefetchScalarGridSpec(
            num_scalar_prefetch=1,
            grid=(B, nt),
            in_specs=[
                pl.BlockSpec((1, tt, F), lambda b, k, lens: (b, k, 0)),
                pl.BlockSpec((1, 1, H), lambda b, k, lens: (b, 0, 0)),
                pl.BlockSpec((1, L, H), lambda b, k, lens: (b, 0, 0)),
                pl.BlockSpec((F, H), lambda b, k, lens: (0, 0)),
                pl.BlockSpec((1, H), lambda b, k, lens: (0, 0)),
            ],
            out_specs=pl.BlockSpec((1, L, H), lambda b, k, lens: (b, 0, 0)),
            scratch_shapes=[
                pltpu.VMEM((L, 1), jnp.float32),   # m (running max)
                pltpu.VMEM((L, 1), jnp.float32),   # l (running denom)
                pltpu.VMEM((L, H), jnp.float32),   # acc (running context)
            ]),
        compiler_params=pltpu.CompilerParams(
            dimension_semantics=("parallel", "arbitrary"),
            vmem_limit_bytes=_vmem_budget(vmem_est)),
        cost_estimate=pl.CostEstimate(
            flops=flops, transcendentals=B * L * T,
            bytes_accessed=bytes_accessed),
    )(lengths, speech, utt3, tok_emb, w_enc, b_enc)


def output_projection(h, w_out, b_out, tile_m=256, tile_v=2048,
                      out_dtype=jnp.float32):
    M, H = h.shape
    V = w_out.shape[1]

    # Lane-dense V tile; pad V to a tile multiple instead of shrinking the tile.
    tv = min(tile_v, _round_up(V, 128))
    v_pad = _round_up(V, tv)
    if v_pad != V:
        w_out = jnp.pad(w_out, ((0, 0), (0, v_pad - V)))
        b_out = jnp.pad(b_out, ((0, 0), (0, v_pad - V)))
    tm = M if M <= tile_m else _pick_tile(M, tile_m)

    out_isize = jnp.dtype(out_dtype).itemsize
    flops = 2 * M * H * v_pad
    bytes_accessed = (M * H * 2 + H * v_pad * 2 + v_pad * 4
                      + M * v_pad * out_isize)
    vmem_est = 2 * (tm * H * 2 + H * tv * 2 + tv * 4) + 2 * tm * tv * out_isize

    logits = pl.pallas_call(
        _proj_kernel,
        out_shape=jax.ShapeDtypeStruct((M, v_pad), out_dtype),
        grid_spec=pltpu.PrefetchScalarGridSpec(
            num_scalar_prefetch=0,
            # V tiles on the OUTER axis, M tiles inner: the (H, tv) W_out tile's
            # block index is constant along the inner axis, so the large weight
            # stream is read from HBM exactly once while small h tiles stream.
            grid=(v_pad // tv, M // tm),
            in_specs=[
                pl.BlockSpec((tm, H), lambda j, i: (i, 0)),
                pl.BlockSpec((H, tv), lambda j, i: (0, j)),
                pl.BlockSpec((1, tv), lambda j, i: (0, j)),
            ],
            out_specs=pl.BlockSpec((tm, tv), lambda j, i: (i, j)),
        ),
        compiler_params=pltpu.CompilerParams(
            dimension_semantics=("parallel", "arbitrary"),
            vmem_limit_bytes=_vmem_budget(vmem_est)),
        cost_estimate=pl.CostEstimate(
            flops=flops, transcendentals=0, bytes_accessed=bytes_accessed),
    )(h, w_out, b_out)
    return logits[:, :V] if v_pad != V else logits


class ASRModelPallas:
    """Deterministically-initialized synthetic ASR model (encoder + decoder)."""

    def __init__(self, feat_dim, hidden_dim, vocab_size, num_utterances, seed=0):
        k = jax.random.PRNGKey(seed)
        ks = jax.random.split(k, 5)
        scale = 0.02
        # bf16 weights / embeddings; f32 biases; f32 MXU accumulation in-kernel.
        self.w_enc = (scale * jax.random.normal(ks[0], (feat_dim, hidden_dim))
                      ).astype(jnp.bfloat16)
        self.b_enc = jnp.zeros((1, hidden_dim), jnp.float32)
        self.utt_embed = (scale * jax.random.normal(ks[1], (num_utterances, hidden_dim))
                          ).astype(jnp.bfloat16)
        self.tok_embed = (scale * jax.random.normal(ks[2], (vocab_size, hidden_dim))
                          ).astype(jnp.bfloat16)
        self.w_out = (scale * jax.random.normal(ks[3], (hidden_dim, vocab_size))
                      ).astype(jnp.bfloat16)
        self.b_out = jnp.zeros((1, vocab_size), jnp.float32)

    def __call__(self, speech_input, utterance_ids, utterance_mask, tokens):
        B, T, _ = speech_input.shape
        L = tokens.shape[1]
        H = self.w_enc.shape[1]
        V = self.w_out.shape[1]

        speech_bf = speech_input.astype(jnp.bfloat16)
        utt_emb = jnp.take(self.utt_embed, utterance_ids, axis=0)   # (B, H) glue gather
        tok_emb = jnp.take(self.tok_embed, tokens, axis=0)          # (B, L, H) glue gather

        # Per-batch valid lengths for scalar prefetch.
        # TODO(synk): assumes contiguous valid-prefix masks (standard for ASR);
        # arbitrary hole masks would require streaming the full mask instead.
        lengths = jnp.sum(utterance_mask > 0, axis=-1).astype(jnp.int32)

        # Fused encoder + flash-style attention (T-chunked, online softmax).
        h = fused_encoder_attention(speech_bf, utt_emb, lengths,
                                    tok_emb, self.w_enc, self.b_enc)  # (B, L, H) bf16

        # Output projection, W_out stationary, lane-dense V tiles.
        logits = output_projection(h.reshape(B * L, H), self.w_out, self.b_out)
        return logits.reshape(B, L, V)


# ----------------------------- main -----------------------------------------

if __name__ == "__main__":
    # Small but lane-aligned demo sizes (F, H, V multiples of 128; T, B*L mult. of 8).
    B, T, F, H, L, V, NU = 2, 64, 128, 128, 16, 1024, 4

    key = jax.random.PRNGKey(0)
    k1, k2, k3 = jax.random.split(key, 3)

    speech_input = jax.random.normal(k1, (B, T, F), dtype=jnp.float32)
    utterance_ids = jax.random.randint(k2, (B,), 0, NU, dtype=jnp.int32)
    # mask: first batch fully valid, second batch half valid
    utterance_mask = jnp.stack(
        [jnp.ones((T,), jnp.float32),
         jnp.concatenate([jnp.ones((T // 2,), jnp.float32),
                          jnp.zeros((T // 2,), jnp.float32)])],
        axis=0)
    tokens = jax.random.randint(k3, (B, L), 0, V, dtype=jnp.int32)

    model = ASRModelPallas(F, H, V, NU, seed=0)
    logits = model(speech_input, utterance_ids, utterance_mask, tokens)
    logits = jax.block_until_ready(logits)

    assert logits.shape == (B, L, V)
    assert jnp.all(jnp.isfinite(logits))
    print("KERNEL_OK")
</pallas_src>

<mosaic_0001>
module attributes {stable_mosaic.version = 11 : i64} {
  func.func @_enc_attn_kernel(%arg0: i32, %arg1: i32, %arg2: memref<2xi32, #tpu.memory_space<smem>>, %arg3: memref<1x64x128xbf16, #tpu.memory_space<vmem>>, %arg4: memref<1x1x128xbf16, #tpu.memory_space<vmem>>, %arg5: memref<1x16x128xbf16, #tpu.memory_space<vmem>>, %arg6: memref<128x128xbf16, #tpu.memory_space<vmem>>, %arg7: memref<1x128xf32, #tpu.memory_space<vmem>>, %arg8: memref<1x16x128xbf16, #tpu.memory_space<vmem>>, %arg9: memref<16x1xf32, #tpu.memory_space<vmem>>, %arg10: memref<16x1xf32, #tpu.memory_space<vmem>>, %arg11: memref<16x128xf32, #tpu.memory_space<vmem>>) attributes {dimension_semantics = [#tpu.dimension_semantics<parallel>, #tpu.dimension_semantics<arbitrary>], iteration_bounds = array<i64: 2, 1>, scalar_prefetch = 1 : i64, scratch_operands = 3 : i64, tpu.core_type = #tpu.core_type<tc>, window_params = [{transform_indices = @transform_0, window_bounds = array<i64: 1, 64, 128>}, {transform_indices = @transform_1, window_bounds = array<i64: 1, 1, 128>}, {transform_indices = @transform_2, window_bounds = array<i64: 1, 16, 128>}, {pipeline_mode = #tpu.pipeline_mode<synchronous>, transform_indices = @transform_3, window_bounds = array<i64: 128, 128>}, {pipeline_mode = #tpu.pipeline_mode<synchronous>, transform_indices = @transform_4, window_bounds = array<i64: 1, 128>}, {transform_indices = @transform_5, window_bounds = array<i64: 1, 16, 128>}]} {
    %0 = arith.index_cast %arg0 : i32 to index
    %1 = memref.load %arg2[%0] : memref<2xi32, #tpu.memory_space<smem>>
    %c0_i32 = arith.constant 0 : i32
    %2 = arith.cmpi eq, %arg1, %c0_i32 : i32
    %3 = arith.extui %2 : i1 to i32
    %c0_i32_0 = arith.constant 0 : i32
    %4 = arith.cmpi ne, %3, %c0_i32_0 : i32
    scf.if %4 {
      %cst = arith.constant 0xFF800000 : f32
      %12 = vector.broadcast %cst : f32 to vector<16x1xf32>
      %c0 = arith.constant 0 : index
      %c0_4 = arith.constant 0 : index
      %13 = vector.load %arg9[%c0, %c0_4] : memref<16x1xf32, #tpu.memory_space<vmem>>, vector<16x1xf32>
      tpu.vector_store %arg9[%c0, %c0_4], %12 {strides = array<i32>} : memref<16x1xf32, #tpu.memory_space<vmem>>, vector<16x1xf32>,
      %cst_5 = arith.constant 0.000000e+00 : f32
      %14 = vector.broadcast %cst_5 : f32 to vector<16x1xf32>
      %c0_6 = arith.constant 0 : index
      %c0_7 = arith.constant 0 : index
      %15 = vector.load %arg10[%c0_6, %c0_7] : memref<16x1xf32, #tpu.memory_space<vmem>>, vector<16x1xf32>
      tpu.vector_store %arg10[%c0_6, %c0_7], %14 {strides = array<i32>} : memref<16x1xf32, #tpu.memory_space<vmem>>, vector<16x1xf32>,
      %cst_8 = arith.constant 0.000000e+00 : f32
      %16 = vector.broadcast %cst_8 : f32 to vector<16x128xf32>
      %c0_9 = arith.constant 0 : index
      %c0_10 = arith.constant 0 : index
      %17 = vector.load %arg11[%c0_9, %c0_10] : memref<16x128xf32, #tpu.memory_space<vmem>>, vector<16x128xf32>
      tpu.vector_store %arg11[%c0_9, %c0_10], %16 {strides = array<i32>} : memref<16x128xf32, #tpu.memory_space<vmem>>, vector<16x128xf32>,
    } else {
    }
    %c64_i32 = arith.constant 64 : i32
    %5 = arith.muli %arg1, %c64_i32 : i32
    %6 = arith.cmpi slt, %5, %1 : i32
    %7 = arith.extui %6 : i1 to i32
    %c0_i32_1 = arith.constant 0 : i32
    %8 = arith.cmpi ne, %7, %c0_i32_1 : i32
    scf.if %8 {
      %c0 = arith.constant 0 : index
      %c0_4 = arith.constant 0 : index
      %c0_5 = arith.constant 0 : index
      %12 = vector.load %arg3[%c0, %c0_4, %c0_5] : memref<1x64x128xbf16, #tpu.memory_space<vmem>>, vector<1x64x128xbf16>
      %13 = vector.shape_cast %12 : vector<1x64x128xbf16> to vector<64x128xbf16>
      %c0_6 = arith.constant 0 : index
      %c0_7 = arith.constant 0 : index
      %c0_8 = arith.constant 0 : index
      %14 = vector.load %arg4[%c0_6, %c0_7, %c0_8] : memref<1x1x128xbf16, #tpu.memory_space<vmem>>, vector<1x1x128xbf16>
      %15 = vector.shape_cast %14 : vector<1x1x128xbf16> to vector<1x128xbf16>
      %c0_9 = arith.constant 0 : index
      %c0_10 = arith.constant 0 : index
      %c0_11 = arith.constant 0 : index
      %16 = vector.load %arg5[%c0_9, %c0_10, %c0_11] : memref<1x16x128xbf16, #tpu.memory_space<vmem>>, vector<1x16x128xbf16>
      %17 = vector.shape_cast %16 : vector<1x16x128xbf16> to vector<16x128xbf16>
      %c0_12 = arith.constant 0 : index
      %c0_13 = arith.constant 0 : index
      %18 = vector.load %arg6[%c0_12, %c0_13] : memref<128x128xbf16, #tpu.memory_space<vmem>>, vector<128x128xbf16>
      %cst = arith.constant dense<0.000000e+00> : vector<64x128xf32>
      %19 = tpu.matmul %13, %18, %cst {dimension_numbers = #tpu.dot_dimension_numbers<[1], [0], [0], [1], [0, 0, 1, 1], [], []>} : vector<64x128xbf16>, vector<128x128xbf16>, vector<64x128xf32> -> vector<64x128xf32>
      %c0_14 = arith.constant 0 : index
      %c0_15 = arith.constant 0 : index
      %20 = vector.load %arg7[%c0_14, %c0_15] : memref<1x128xf32, #tpu.memory_space<vmem>>, vector<1x128xf32>
      %21 = vector.broadcast %20 : vector<1x128xf32> to vector<64x128xf32>
      %22 = arith.addf %19, %21 : vector<64x128xf32>
      %23 = arith.extf %15 : vector<1x128xbf16> to vector<1x128xf32>
      %24 = vector.broadcast %23 : vector<1x128xf32> to vector<64x128xf32>
      %25 = arith.addf %22, %24 : vector<64x128xf32>
      %cst_16 = arith.constant 0.000000e+00 : f32
      %26 = vector.broadcast %cst_16 : f32 to vector<64x128xf32>
      %27 = arith.maximumf %25, %26 : vector<64x128xf32>
      %28 = arith.truncf %27 : vector<64x128xf32> to vector<64x128xbf16>
      %c64_i32_17 = arith.constant 64 : i32
      %29 = arith.muli %arg1, %c64_i32_17 : i32
      %30 = tpu.iota {dimensions = array<i32: 1>} : vector<1x64xi32>
      %31 = vector.broadcast %29 : i32 to vector<1x64xi32>
      %32 = arith.addi %31, %30 : vector<1x64xi32>
      %33 = vector.broadcast %1 : i32 to vector<1x64xi32>
      %34 = arith.cmpi slt, %32, %33 : vector<1x64xi32>
      %cst_18 = arith.constant dense<0.000000e+00> : vector<16x64xf32>
      %35 = tpu.matmul %17, %28, %cst_18 {dimension_numbers = #tpu.dot_dimension_numbers<[1], [1], [0], [0], [0, 0, 1, 0], [], []>} : vector<16x128xbf16>, vector<64x128xbf16>, vector<16x64xf32> -> vector<16x64xf32>
      %cst_19 = arith.constant 0.0883883461 : f32
      %36 = vector.broadcast %cst_19 : f32 to vector<16x64xf32>
      %37 = arith.mulf %35, %36 : vector<16x64xf32>
      %cst_20 = arith.constant -1.000000e+30 : f32
      %38 = vector.shape_cast %34 : vector<1x64xi1> to vector<1x64xi1>
      %39 = vector.broadcast %38 : vector<1x64xi1> to vector<16x64xi1>
      %40 = vector.broadcast %cst_20 : f32 to vector<16x64xf32>
      %41 = arith.select %39, %37, %40 : vector<16x64xi1>, vector<16x64xf32>
      %c0_21 = arith.constant 0 : index
      %c0_22 = arith.constant 0 : index
      %42 = vector.load %arg9[%c0_21, %c0_22] : memref<16x1xf32, #tpu.memory_space<vmem>>, vector<16x1xf32>
      %cst_23 = arith.constant dense<0xFF800000> : vector<16xf32>
      %43 = vector.multi_reduction <maximumf>, %41, %cst_23 [1] : vector<16x64xf32> to vector<16xf32>
      %44 = vector.shape_cast %43 : vector<16xf32> to vector<16x1xf32>
      %45 = arith.maximumf %42, %44 : vector<16x1xf32>
      %c0_24 = arith.constant 0 : index
      %c0_25 = arith.constant 0 : index
      %46 = vector.load %arg9[%c0_24, %c0_25] : memref<16x1xf32, #tpu.memory_space<vmem>>, vector<16x1xf32>
      %47 = arith.subf %46, %45 : vector<16x1xf32>
      %48 = math.exp %47 : vector<16x1xf32>
      %49 = vector.broadcast %45 : vector<16x1xf32> to vector<16x64xf32>
      %50 = arith.subf %41, %49 : vector<16x64xf32>
      %51 = math.exp %50 : vector<16x64xf32>
      %c0_26 = arith.constant 0 : index
      %c0_27 = arith.constant 0 : index
      %52 = vector.load %arg10[%c0_26, %c0_27] : memref<16x1xf32, #tpu.memory_space<vmem>>, vector<16x1xf32>
      %53 = arith.mulf %48, %52 : vector<16x1xf32>
      %cst_28 = arith.constant dense<0.000000e+00> : vector<16xf32>
      %54 = vector.multi_reduction <add>, %51, %cst_28 [1] : vector<16x64xf32> to vector<16xf32>
      %55 = vector.shape_cast %54 : vector<16xf32> to vector<16x1xf32>
      %56 = arith.addf %53, %55 : vector<16x1xf32>
      %c0_29 = arith.constant 0 : index
      %c0_30 = arith.constant 0 : index
      %57 = vector.load %arg10[%c0_29, %c0_30] : memref<16x1xf32, #tpu.memory_space<vmem>>, vector<16x1xf32>
      tpu.vector_store %arg10[%c0_29, %c0_30], %56 {strides = array<i32>} : memref<16x1xf32, #tpu.memory_space<vmem>>, vector<16x1xf32>,
      %c0_31 = arith.constant 0 : index
      %c0_32 = arith.constant 0 : index
      %58 = vector.load %arg11[%c0_31, %c0_32] : memref<16x128xf32, #tpu.memory_space<vmem>>, vector<16x128xf32>
      %59 = vector.broadcast %48 : vector<16x1xf32> to vector<16x128xf32>
      %60 = arith.mulf %59, %58 : vector<16x128xf32>
      %61 = arith.truncf %51 : vector<16x64xf32> to vector<16x64xbf16>
      %cst_33 = arith.constant dense<0.000000e+00> : vector<16x128xf32>
      %62 = tpu.matmul %61, %28, %cst_33 {dimension_numbers = #tpu.dot_dimension_numbers<[1], [0], [0], [1], [0, 0, 1, 1], [], []>} : vector<16x64xbf16>, vector<64x128xbf16>, vector<16x128xf32> -> vector<16x128xf32>
      %63 = arith.addf %60, %62 : vector<16x128xf32>
      %c0_34 = arith.constant 0 : index
      %c0_35 = arith.constant 0 : index
      %64 = vector.load %arg11[%c0_34, %c0_35] : memref<16x128xf32, #tpu.memory_space<vmem>>, vector<16x128xf32>
      tpu.vector_store %arg11[%c0_34, %c0_35], %63 {strides = array<i32>} : memref<16x128xf32, #tpu.memory_space<vmem>>, vector<16x128xf32>,
      %c0_36 = arith.constant 0 : index
      %c0_37 = arith.constant 0 : index
      %65 = vector.load %arg9[%c0_36, %c0_37] : memref<16x1xf32, #tpu.memory_space<vmem>>, vector<16x1xf32>
      tpu.vector_store %arg9[%c0_36, %c0_37], %45 {strides = array<i32>} : memref<16x1xf32, #tpu.memory_space<vmem>>, vector<16x1xf32>,
    } else {
    }
    %c0_i32_2 = arith.constant 0 : i32
    %9 = arith.cmpi eq, %arg1, %c0_i32_2 : i32
    %10 = arith.extui %9 : i1 to i32
    %c0_i32_3 = arith.constant 0 : i32
    %11 = arith.cmpi ne, %10, %c0_i32_3 : i32
    scf.if %11 {
      %c0 = arith.constant 0 : index
      %c0_4 = arith.constant 0 : index
      %c0_5 = arith.constant 0 : index
      %12 = vector.load %arg5[%c0, %c0_4, %c0_5] : memref<1x16x128xbf16, #tpu.memory_space<vmem>>, vector<1x16x128xbf16>
      %13 = vector.shape_cast %12 : vector<1x16x128xbf16> to vector<16x128xbf16>
      %c0_6 = arith.constant 0 : index
      %c0_7 = arith.constant 0 : index
      %14 = vector.load %arg10[%c0_6, %c0_7] : memref<16x1xf32, #tpu.memory_space<vmem>>, vector<16x1xf32>
      %cst = arith.constant 1.000000e-30 : f32
      %15 = vector.broadcast %cst : f32 to vector<16x1xf32>
      %16 = arith.maximumf %14, %15 : vector<16x1xf32>
      %17 = tpu.reciprocal %16 {approx = true} : vector<16x1xf32> -> vector<16x1xf32>
      %18 = arith.extf %13 : vector<16x128xbf16> to vector<16x128xf32>
      %c0_8 = arith.constant 0 : index
      %c0_9 = arith.constant 0 : index
      %19 = vector.load %arg11[%c0_8, %c0_9] : memref<16x128xf32, #tpu.memory_space<vmem>>, vector<16x128xf32>
      %20 = vector.broadcast %17 : vector<16x1xf32> to vector<16x128xf32>
      %21 = arith.mulf %19, %20 : vector<16x128xf32>
      %22 = arith.addf %18, %21 : vector<16x128xf32>
      %23 = arith.truncf %22 : vector<16x128xf32> to vector<16x128xbf16>
      %c0_10 = arith.constant 0 : index
      %c0_11 = arith.constant 0 : index
      %c0_12 = arith.constant 0 : index
      %24 = vector.load %arg8[%c0_10, %c0_11, %c0_12] : memref<1x16x128xbf16, #tpu.memory_space<vmem>>, vector<1x16x128xbf16>
      %25 = vector.shape_cast %24 : vector<1x16x128xbf16> to vector<16x128xbf16>
      %26 = vector.shape_cast %23 : vector<16x128xbf16> to vector<1x16x128xbf16>
      tpu.vector_store %arg8[%c0_10, %c0_11, %c0_12], %26 {strides = array<i32>} : memref<1x16x128xbf16, #tpu.memory_space<vmem>>, vector<1x16x128xbf16>,
    } else {
    }
    return
  }
  func.func @transform_0(%arg0: i32, %arg1: i32, %arg2: memref<2xi32, #tpu.memory_space<smem>>) -> (i32, i32, i32) {
    %c0_i32 = arith.constant 0 : i32
    %c0_i32_0 = arith.constant 0 : i32
    return %arg0, %arg1, %c0_i32 : i32, i32, i32
  }
  func.func @transform_1(%arg0: i32, %arg1: i32, %arg2: memref<2xi32, #tpu.memory_space<smem>>) -> (i32, i32, i32) {
    %c0_i32 = arith.constant 0 : i32
    %c0_i32_0 = arith.constant 0 : i32
    %c0_i32_1 = arith.constant 0 : i32
    return %arg0, %c0_i32, %c0_i32_0 : i32, i32, i32
  }
  func.func @transform_2(%arg0: i32, %arg1: i32, %arg2: memref<2xi32, #tpu.memory_space<smem>>) -> (i32, i32, i32) {
    %c0_i32 = arith.constant 0 : i32
    %c0_i32_0 = arith.constant 0 : i32
    %c0_i32_1 = arith.constant 0 : i32
    return %arg0, %c0_i32, %c0_i32_0 : i32, i32, i32
  }
  func.func @transform_3(%arg0: i32, %arg1: i32, %arg2: memref<2xi32, #tpu.memory_space<smem>>) -> (i32, i32) {
    %c0_i32 = arith.constant 0 : i32
    %c0_i32_0 = arith.constant 0 : i32
    %c0_i32_1 = arith.constant 0 : i32
    return %c0_i32, %c0_i32_0 : i32, i32
  }
  func.func @transform_4(%arg0: i32, %arg1: i32, %arg2: memref<2xi32, #tpu.memory_space<smem>>) -> (i32, i32) {
    %c0_i32 = arith.constant 0 : i32
    %c0_i32_0 = arith.constant 0 : i32
    %c0_i32_1 = arith.constant 0 : i32
    return %c0_i32, %c0_i32_0 : i32, i32
  }
  func.func @transform_5(%arg0: i32, %arg1: i32, %arg2: memref<2xi32, #tpu.memory_space<smem>>) -> (i32, i32, i32) {
    %c0_i32 = arith.constant 0 : i32
    %c0_i32_0 = arith.constant 0 : i32
    %c0_i32_1 = arith.constant 0 : i32
    return %arg0, %c0_i32, %c0_i32_0 : i32, i32, i32
  }
}

</mosaic_0001>

<llo_original>
// kernel: tpu_custom_call.1
$region0: #{tpu_custom_call.1}
  #allocation0 [shape = 'u32[]', space=smem, size = 0x4, offset = 0x4, fixed_abs, tag = 'smem constant byte address 0x4 - core index']
  #allocation1 [shape = 'u32[144,128]{1,0:T(1,128)}', space=vmem, size = 0x12000, scoped, tag = 'internal scratch']
  #allocation2 [shape = 'f32[16,1]{1,0:T(8,128)}', space=vmem, size = 0x2000, scoped, tag = 'scratch operand']
  #allocation3 [shape = 'f32[16,1]{1,0:T(8,128)}', space=vmem, size = 0x2000, scoped, tag = 'scratch operand']
  #allocation4 [shape = 'f32[16,128]{1,0:T(8,128)}', space=vmem, size = 0x2000, scoped, tag = 'scratch operand']
  #allocation5 [shape = 's32[1]{0}', space=sflag, size = 0x4, scoped, tag = 'scoped memory for tpu_custom_call.1']
  #allocation6 [shape = 'u8[512]{0}', space=smem, size = 0x200, scoped, tag = 'prefetched SMEM operand 0']
  %s0 = inlined_call_operand.vmem [shape: s32[2], index: 0, kind: input, shape index: {}]
  %s1 = inlined_call_operand.hbm [shape: bf16[2,64,128], index: 1, kind: input, shape index: {}]
  %s2 = inlined_call_operand.vmem [shape: bf16[2,1,128], index: 2, kind: input, shape index: {}]
  %s3 = inlined_call_operand.hbm [shape: bf16[2,16,128], index: 3, kind: input, shape index: {}]
  %s4 = inlined_call_operand.hbm [shape: bf16[128,128], index: 4, kind: input, shape index: {}]
  %s5 = inlined_call_operand.vmem [shape: f32[1,128], index: 5, kind: input, shape index: {}]
  %s6 = inlined_call_operand.hbm [shape: bf16[2,16,128], index: 6, kind: output, shape index: {}]
  %s7 = sld [smem:[#allocation0]]
  $region77: #{tpu_custom_call.1} parent=0
    _
  %s9 = ssub.s32 1, %s7
  %s10 = scalar_select 0, %s9, %s7
  %s11 = sshll.u32 %s0, 4
  %s12 = int_to_ptr.vmem [resolvable:$true] %s11
  %14 = dma.vmem_to_smem %s12, 16, [#allocation6], [#allocation5]
  %15 = dma.done [#allocation5], 16
  %16 = sfence
  $region1: #{tpu_custom_call.1} parent=0
    #allocation7 [shape = 'u8[32768]{0}', space=vmem, size = 0x8000, scoped, tag = 'input window, operand 1']
    #allocation8 [shape = 's32[2]{0}', space=sflag, size = 0x8, scoped, tag = 'scoped memory for tpu_custom_call.1']
    #allocation9 [shape = 's32[2]{0}', space=sflag, size = 0x8, scoped, tag = 'scoped memory for tpu_custom_call.1']
    #allocation10 [shape = 'u8[8192]{0}', space=vmem, size = 0x2000, scoped, tag = 'input window, operand 3']
    #allocation11 [shape = 's32[2]{0}', space=sflag, size = 0x8, scoped, tag = 'scoped memory for tpu_custom_call.1']
    #allocation12 [shape = 'u8[32768]{0}', space=vmem, size = 0x8000, scoped, tag = 'input window, operand 4, single buffered']
    #allocation13 [shape = 'u8[8192]{0}', space=vmem, size = 0x2000, scoped, tag = 'output window, operand 0']
    %17 = vsyncpa [#allocation8], 0
    %s18 = scalar_lea.sflag [#allocation8], 1
    %19 = vsyncpa %s18, 0
    %20 = vsyncpa [#allocation11], 0
    %s21 = scalar_lea.sflag [#allocation11], 1
    %22 = vsyncpa %s21, 0
    %23 = vsyncpa [#allocation9], 0
    %s24 = scalar_lea.sflag [#allocation9], 1
    %25 = vsyncpa %s24, 0
    loop: start=0, step=1, limit=4
    $region2: #{tpu_custom_call.1} parent=1 // loop_pre_header
      _
    $region3: #{tpu_custom_call.1} parent=1 // loop_header
      %s27 = sphi 0, %s31
      %p28 = scmp.ge.s32.totalorder %s27, 4
      %s34 = sphi 0, %s46
      %s35 = sphi 0, %s42
      %s36 = sphi 0, %s34
      %s37 = sphi 0, %s35
      %s38 = sphi 0, %s36
      %s39 = sphi 0, %s37
      %s51 = sphi 0, %s53
      %s54 = sphi 0, %s51
      %s55 = sphi 0, %s54
      %s71 = sphi 0, %s55
      %s77 = sphi 0, %s79
      %s80 = sphi 0, %s77
      %s81 = sphi 0, %s80
      %s97 = sphi 0, %s81
      %s103 = sphi 0, %s105
      %s106 = sphi 0, %s103
      %s107 = sphi 0, %s106
      %s123 = sphi 0, %s107
      %s127 = sphi 0, %s127
      %s129 = sphi 0, %s127
      %s130 = sphi 0, %s129
      %s144 = sphi 0, %s130
      %s148 = sphi 0, %s148
      %s150 = sphi 0, %s148
      %s151 = sphi 0, %s150
      %s165 = sphi 0, %s151
      %s171 = sphi 0, %s173
      %s174 = sphi 0, %s171
      %s175 = sphi 0, %s174
      %s191 = sphi 0, %s175
    $region4: #{tpu_custom_call.1} parent=1 // loop_header_branch
      %30 = sbr.rel (%p28) target = $region8
    $region5: #{tpu_custom_call.1} parent=1 // loop_body
      %s32 = ssub.s32 %s27, 1
      %s33 = ssub.s32 %s27, 2
      %s40 = sadd.s32 1, %s35
      %p41 = scmp.ge.s32.totalorder %s40, 1
      %s42 = scalar_select %p41, 0, %s40
      %s43 = sadd.s32 1, %s34
      %s44 = scalar_select %p41, %s43, %s34
      %p45 = scmp.ge.s32.totalorder %s44, 2
      %s46 = scalar_select %p45, 0, %s44
      %s47 = ssub.s32 %s34, %s46
      %s48 = ssub.s32 %s35, %s42
      %s49 = sor.u32 %s47, %s48
      %p50 = scmp.eq.s32.totalorder %s49, 0
      %s52 = sadd.s32 %s51, 1
      %s53 = scalar_select %p50, %s51, %s52
      %p56 = pneg %p50
      %p57 = scmp.eq.s32.totalorder %s27, 1
      %p58 = por %p56, %p57
      %p59 = scmp.ne.s32.totalorder %s51, %s54
      %p60 = scmp.eq.s32.totalorder %s27, 0
      %p61 = por %p59, %p60
      %p62 = scmp.ne.s32.totalorder %s51, %s54
      %p63 = scmp.eq.s32.totalorder %s32, 1
      %p64 = por %p62, %p63
      %p65 = scmp.ne.s32.totalorder %s54, %s55
      %p66 = scmp.eq.s32.totalorder %s32, 0
      %p67 = por %p65, %p66
      %p68 = scmp.ne.s32.totalorder %s54, %s55
      %p69 = scmp.eq.s32.totalorder %s33, 1
      %p70 = por %p68, %p69
      %p72 = scmp.ne.s32.totalorder %s55, %s71
      %p73 = scmp.eq.s32.totalorder %s33, 0
      %p74 = por %p72, %p73
      %s75 = ssub.s32 %s34, %s46
      %p76 = scmp.eq.s32.totalorder %s75, 0
      %s78 = sadd.s32 %s77, 1
      %s79 = scalar_select %p76, %s77, %s78
      %p82 = pneg %p76
      %p83 = scmp.eq.s32.totalorder %s27, 1
      %p84 = por %p82, %p83
      %p85 = scmp.ne.s32.totalorder %s77, %s80
      %p86 = scmp.eq.s32.totalorder %s27, 0
      %p87 = por %p85, %p86
      %p88 = scmp.ne.s32.totalorder %s77, %s80
      %p89 = scmp.eq.s32.totalorder %s32, 1
      %p90 = por %p88, %p89
      %p91 = scmp.ne.s32.totalorder %s80, %s81
      %p92 = scmp.eq.s32.totalorder %s32, 0
      %p93 = por %p91, %p92
      %p94 = scmp.ne.s32.totalorder %s80, %s81
      %p95 = scmp.eq.s32.totalorder %s33, 1
      %p96 = por %p94, %p95
      %p98 = scmp.ne.s32.totalorder %s81, %s97
      %p99 = scmp.eq.s32.totalorder %s33, 0
      %p100 = por %p98, %p99
      %s101 = ssub.s32 %s34, %s46
      %p102 = scmp.eq.s32.totalorder %s101, 0
      %s104 = sadd.s32 %s103, 1
      %s105 = scalar_select %p102, %s103, %s104
      %p108 = pneg %p102
      %p109 = scmp.eq.s32.totalorder %s27, 1
      %p110 = por %p108, %p109
      %p111 = scmp.ne.s32.totalorder %s103, %s106
      %p112 = scmp.eq.s32.totalorder %s27, 0
      %p113 = por %p111, %p112
      %p114 = scmp.ne.s32.totalorder %s103, %s106
      %p115 = scmp.eq.s32.totalorder %s32, 1
      %p116 = por %p114, %p115
      %p117 = scmp.ne.s32.totalorder %s106, %s107
      %p118 = scmp.eq.s32.totalorder %s32, 0
      %p119 = por %p117, %p118
      %p120 = scmp.ne.s32.totalorder %s106, %s107
      %p121 = scmp.eq.s32.totalorder %s33, 1
      %p122 = por %p120, %p121
      %p124 = scmp.ne.s32.totalorder %s107, %s123
      %p125 = scmp.eq.s32.totalorder %s33, 0
      %p126 = por %p124, %p125
      %s128 = sadd.s32 %s127, 1
      %p131 = scmp.eq.s32.totalorder %s27, 1
      %p132 = scmp.ne.s32.totalorder %s127, %s129
      %p133 = scmp.eq.s32.totalorder %s27, 0
      %p134 = por %p132, %p133
      %p135 = scmp.ne.s32.totalorder %s127, %s129
      %p136 = scmp.eq.s32.totalorder %s32, 1
      %p137 = por %p135, %p136
      %p138 = scmp.ne.s32.totalorder %s129, %s130
      %p139 = scmp.eq.s32.totalorder %s32, 0
      %p140 = por %p138, %p139
      %p141 = scmp.ne.s32.totalorder %s129, %s130
      %p142 = scmp.eq.s32.totalorder %s33, 1
      %p143 = por %p141, %p142
      %p145 = scmp.ne.s32.totalorder %s130, %s144
      %p146 = scmp.eq.s32.totalorder %s33, 0
      %p147 = por %p145, %p146
      %s149 = sadd.s32 %s148, 1
      %p152 = scmp.eq.s32.totalorder %s27, 1
      %p153 = scmp.ne.s32.totalorder %s148, %s150
      %p154 = scmp.eq.s32.totalorder %s27, 0
      %p155 = por %p153, %p154
      %p156 = scmp.ne.s32.totalorder %s148, %s150
      %p157 = scmp.eq.s32.totalorder %s32, 1
      %p158 = por %p156, %p157
      %p159 = scmp.ne.s32.totalorder %s150, %s151
      %p160 = scmp.eq.s32.totalorder %s32, 0
      %p161 = por %p159, %p160
      %p162 = scmp.ne.s32.totalorder %s150, %s151
      %p163 = scmp.eq.s32.totalorder %s33, 1
      %p164 = por %p162, %p163
      %p166 = scmp.ne.s32.totalorder %s151, %s165
      %p167 = scmp.eq.s32.totalorder %s33, 0
      %p168 = por %p166, %p167
      %s169 = ssub.s32 %s34, %s46
      %p170 = scmp.eq.s32.totalorder %s169, 0
      %s172 = sadd.s32 %s171, 1
      %s173 = scalar_select %p170, %s171, %s172
      %p176 = pneg %p170
      %p177 = scmp.eq.s32.totalorder %s27, 1
      %p178 = por %p176, %p177
      %p179 = scmp.ne.s32.totalorder %s171, %s174
      %p180 = scmp.eq.s32.totalorder %s27, 0
      %p181 = por %p179, %p180
      %p182 = scmp.ne.s32.totalorder %s171, %s174
      %p183 = scmp.eq.s32.totalorder %s32, 1
      %p184 = por %p182, %p183
      %p185 = scmp.ne.s32.totalorder %s174, %s175
      %p186 = scmp.eq.s32.totalorder %s32, 0
      %p187 = por %p185, %p186
      %p188 = scmp.ne.s32.totalorder %s174, %s175
      %p189 = scmp.eq.s32.totalorder %s33, 1
      %p190 = por %p188, %p189
      %p192 = scmp.ne.s32.totalorder %s175, %s191
      %p193 = scmp.eq.s32.totalorder %s33, 0
      %p194 = por %p192, %p193
      %p195 = scmp.le.s32.totalorder 1, %s27
      %p196 = scmp.lt.s32.totalorder %s27, 3
      %p197 = pnand %p195, %p196
      %p198 = pneg %p197
      // Predicated region
      $region9: #{tpu_custom_call.1} parent=5 // pred_check
        _
      $region10: #{tpu_custom_call.1} parent=5 // pred_check_branch
        %200 = sbr.rel (%p197) target = $region12
      $region11: #{tpu_custom_call.1} parent=5 // pred_region
        %s201 = ssub.s32 %s27, 1
        // Predicated region
        $region13: #{tpu_custom_call.1} parent=11 // pred_check
          %p202 = pneg %p140
        $region14: #{tpu_custom_call.1} parent=11 // pred_check_branch
          %204 = sbr.rel (%p202) target = $region16
        $region15: #{tpu_custom_call.1} parent=11 // pred_region
          %s206 = ssub.s32 1024, 1024
          %207 = vsyncadd [#allocation11], %s206
          %s208 = sshll.u32 [#allocation12], 4
          %s209 = int_to_ptr.vmem [resolvable:$true] %s208
          %214 = dma.hbm_to_vmem [thread:$0]  %s4, 1024, %s209, [#allocation11], 64, 64, 4
        $region16: #{tpu_custom_call.1} parent=11 // pred_fallthru
          _
        // Predicated region
        $region17: #{tpu_custom_call.1} parent=11 // pred_check
          %p215 = pneg %p161
        $region18: #{tpu_custom_call.1} parent=11 // pred_check_branch
          %217 = sbr.rel (%p215) target = $region20
        $region19: #{tpu_custom_call.1} parent=11 // pred_region
          _
        $region20: #{tpu_custom_call.1} parent=11 // pred_fallthru
          _
      $region12: #{tpu_custom_call.1} parent=5 // pred_fallthru
        _
      %p218 = scmp.lt.s32.totalorder %s27, 2
      // Predicated region
      $region21: #{tpu_custom_call.1} parent=5 // pred_check
        %p219 = pneg %p218
      $region22: #{tpu_custom_call.1} parent=5 // pred_check_branch
        %221 = sbr.rel (%p219) target = $region24
      $region23: #{tpu_custom_call.1} parent=5 // pred_region
        // Predicated region
        $region25: #{tpu_custom_call.1} parent=23 // pred_check
          %p222 = pneg %p61
        $region26: #{tpu_custom_call.1} parent=23 // pred_check_branch
          %224 = sbr.rel (%p222) target = $region28
        $region27: #{tpu_custom_call.1} parent=23 // pred_region
          %s225 = sand.u32 %s51, 1
          %s226 = scalar_lea.sflag [#allocation8], %s225
          %s227 = sand.u32 %s51, 1
          %s228 = smul.addr %s227, 32
          %s229 = scalar_lea.vmem [#allocation7], %s228
          %s230 = smul.u32 8, %s35
          %s232 = ssub.s32 512, 512
          %233 = vsyncadd %s226, %s232
          %s234 = smul.addr %s34, 8
          %s235 = sadd.s32 %s230, %s234
          %s236 = smul.addr %s235, 64
          %s237 = scalar_lea.hbm %s1, %s236
          %s238 = sshll.u32 %s229, 4
          %s239 = int_to_ptr.vmem [resolvable:$true] %s238
          %244 = dma.hbm_to_vmem [thread:$0]  %s237, 512, %s239, %s226, 64, 64, 4
        $region28: #{tpu_custom_call.1} parent=23 // pred_fallthru
          _
        // Predicated region
        $region29: #{tpu_custom_call.1} parent=23 // pred_check
          %p245 = pneg %p87
        $region30: #{tpu_custom_call.1} parent=23 // pred_check_branch
          %247 = sbr.rel (%p245) target = $region32
        $region31: #{tpu_custom_call.1} parent=23 // pred_region
          %p248 = scmp.lt.s32.totalorder %s34, 1
          %s249 = scalar_select %p248, %s34, 1
          %s250 = scalar_lea.vmem %s2, %s249
        $region32: #{tpu_custom_call.1} parent=23 // pred_fallthru
          _
        // Predicated region
        $region33: #{tpu_custom_call.1} parent=23 // pred_check
          %p251 = pneg %p113
        $region34: #{tpu_custom_call.1} parent=23 // pred_check_branch
          %253 = sbr.rel (%p251) target = $region36
        $region35: #{tpu_custom_call.1} parent=23 // pred_region
          %s254 = sand.u32 %s27, 1
          %s255 = scalar_lea.sflag [#allocation11], %s254
          %s256 = sand.u32 %s103, 1
          %s257 = smul.addr %s256, 8
          %s258 = scalar_lea.vmem [#allocation10], %s257
          %s260 = ssub.s32 128, 128
          %261 = vsyncadd %s255, %s260
          %s262 = smul.addr %s34, 2
          %s263 = smul.addr %s262, 64
          %s264 = scalar_lea.hbm %s3, %s263
          %s265 = sshll.u32 %s258, 4
          %s266 = int_to_ptr.vmem [resolvable:$true] %s265
          %271 = dma.hbm_to_vmem [thread:$0]  %s264, 128, %s266, %s255, 64, 64, 4
        $region36: #{tpu_custom_call.1} parent=23 // pred_fallthru
          _
      $region24: #{tpu_custom_call.1} parent=5 // pred_fallthru
        _
      %p272 = scmp.le.s32.totalorder 1, %s27
      %p273 = scmp.lt.s32.totalorder %s27, 3
      %p274 = pnand %p272, %p273
      %p275 = pneg %p274
      // Predicated region
      $region37: #{tpu_custom_call.1} parent=5 // pred_check
        _
      $region38: #{tpu_custom_call.1} parent=5 // pred_check_branch
        %277 = sbr.rel (%p274) target = $region40
      $region39: #{tpu_custom_call.1} parent=5 // pred_region
        %s278 = ssub.s32 %s27, 1
        %s279 = sand.u32 %s54, 1
        %s280 = scalar_lea.sflag [#allocation8], %s279
        %s281 = sand.u32 %s54, 1
        %s282 = smul.addr %s281, 32
        %s283 = scalar_lea.vmem [#allocation7], %s282
        // Predicated region
        $region41: #{tpu_custom_call.1} parent=39 // pred_check
          %p284 = pneg %p67
        $region42: #{tpu_custom_call.1} parent=39 // pred_check_branch
          %286 = sbr.rel (%p284) target = $region44
        $region43: #{tpu_custom_call.1} parent=39 // pred_region
          %287 = dma.done %s280, 512
        $region44: #{tpu_custom_call.1} parent=39 // pred_fallthru
          _
        %s288 = sand.u32 %s32, 1
        %s289 = scalar_lea.sflag [#allocation11], %s288
        %s290 = sand.u32 %s106, 1
        %s291 = smul.addr %s290, 8
        %s292 = scalar_lea.vmem [#allocation10], %s291
        // Predicated region
        $region45: #{tpu_custom_call.1} parent=39 // pred_check
          %p293 = pneg %p119
        $region46: #{tpu_custom_call.1} parent=39 // pred_check_branch
          %295 = sbr.rel (%p293) target = $region48
        $region47: #{tpu_custom_call.1} parent=39 // pred_region
          %296 = dma.done %s289, 128
        $region48: #{tpu_custom_call.1} parent=39 // pred_fallthru
          _
        // Predicated region
        $region49: #{tpu_custom_call.1} parent=39 // pred_check
          %p297 = pneg %p140
        $region50: #{tpu_custom_call.1} parent=39 // pred_check_branch
          %299 = sbr.rel (%p297) target = $region52
        $region51: #{tpu_custom_call.1} parent=39 // pred_region
          %300 = dma.done [#allocation11], 1024
        $region52: #{tpu_custom_call.1} parent=39 // pred_fallthru
          _
        %s301 = sand.u32 %s54, 1
        %s302 = scalar_lea.sflag [#allocation8], %s301
        %s303 = sand.u32 %s54, 1
        %s304 = smul.addr %s303, 32
        %s305 = scalar_lea.vmem [#allocation7], %s304
        %p306 = pneg %p67
        %p307 = pneg %p64
        %p308 = scmp.lt.s32.totalorder %s36, 1
        %s309 = scalar_select %p308, %s36, 1
        %s310 = scalar_lea.vmem %s2, %s309
        %p311 = pneg %p93
        %p312 = pneg %p90
        %s313 = sand.u32 %s32, 1
        %s314 = scalar_lea.sflag [#allocation11], %s313
        %s315 = sand.u32 %s106, 1
        %s316 = smul.addr %s315, 8
        %s317 = scalar_lea.vmem [#allocation10], %s316
        %p318 = pneg %p119
        %p319 = pneg %p116
        %p320 = pneg %p140
        %p321 = pneg %p137
        %p322 = pneg %p161
        %p323 = pneg %p158
        %p324 = pneg %p187
        %p325 = pneg %p184
        %s326 = sand.u32 %s174, 1
        %s327 = scalar_lea.sflag [#allocation9], %s326
        %s328 = sand.u32 %s174, 1
        %s329 = smul.addr %s328, 8
        %s330 = scalar_lea.vmem [#allocation13], %s329
        %s331 = smul.u32 8, %s37
        %p332 = scmp.lt.s32.totalorder %s36, 1
        %s333 = scalar_select %p332, %s36, 1
        %s334 = scalar_lea.vmem %s2, %s333
        %s336 = sld [smem:[#allocation6 + %s36]]
        %p337 = scmp.eq.s32.totalorder %s37, 0
        // Predicated region
        $region53: #{tpu_custom_call.1} parent=39 // pred_check
          %p338 = pneg %p337
        $region54: #{tpu_custom_call.1} parent=39 // pred_check_branch
          %340 = sbr.rel (%p338) target = $region56
        $region55: #{tpu_custom_call.1} parent=39 // pred_region
          %vm341 = vcmask 7168
          %342 = vst.msk [vmem:[#allocation2] sm:$0xff] %vm341, -inf
          %343 = vst.msk [vmem:[#allocation2 + $0x8] sm:$0xff] %vm341, -inf
          %344 = vst.msk [vmem:[#allocation3] sm:$0xff] %vm341, 0.0
          %345 = vst.msk [vmem:[#allocation3 + $0x8] sm:$0xff] %vm341, 0.0
          %346 = vst [vmem:[#allocation4] sm:$0xff] 0.0
          %347 = vst [vmem:[#allocation4 + $0x8] sm:$0xff] 0.0
        $region56: #{tpu_custom_call.1} parent=39 // pred_fallthru
          _
        %s348 = smul.u32 %s37, 64
        %p349 = scmp.lt.s32.totalorder %s348, %s336
        // Predicated region
        $region57: #{tpu_custom_call.1} parent=39 // pred_check
          %p350 = pneg %p349
        $region58: #{tpu_custom_call.1} parent=39 // pred_check_branch
          %352 = sbr.rel (%p350) target = $region60
        $region59: #{tpu_custom_call.1} parent=39 // pred_region
          %v353 = vld [vmem:[%s283] sm:$0xf]
          %v354 = vld [vmem:[%s283 + $0x4] sm:$0xf]
          %v355 = vld [vmem:[%s283 + $0x8] sm:$0xf]
          %v356 = vld [vmem:[%s283 + $0xc] sm:$0xf]
          %v357 = vld [vmem:[%s283 + $0x10] sm:$0xf]
          %v358 = vld [vmem:[%s283 + $0x14] sm:$0xf]
          %v359 = vld [vmem:[%s283 + $0x18] sm:$0xf]
          %v360 = vld [vmem:[%s283 + $0x1c] sm:$0xf]
          %v361 = vld [vmem:[%s334] sm:$0x1]
          %v362 = vld [vmem:[%s292] sm:$0xf]
          %v363 = vld [vmem:[%s292 + $0x4] sm:$0xf]
          %v364 = vld [vmem:[#allocation12] sm:$0xf]
          %v365 = vld [vmem:[#allocation12 + $0x4] sm:$0xf]
          %v366 = vld [vmem:[#allocation12 + $0x8] sm:$0xf]
          %v367 = vld [vmem:[#allocation12 + $0xc] sm:$0xf]
          %v368 = vld [vmem:[#allocation12 + $0x10] sm:$0xf]
          %v369 = vld [vmem:[#allocation12 + $0x14] sm:$0xf]
          %v370 = vld [vmem:[#allocation12 + $0x18] sm:$0xf]
          %v371 = vld [vmem:[#allocation12 + $0x1c] sm:$0xf]
          %v372 = vld [vmem:[#allocation12 + $0x20] sm:$0xf]
          %v373 = vld [vmem:[#allocation12 + $0x24] sm:$0xf]
          %v374 = vld [vmem:[#allocation12 + $0x28] sm:$0xf]
          %v375 = vld [vmem:[#allocation12 + $0x2c] sm:$0xf]
          %v376 = vld [vmem:[#allocation12 + $0x30] sm:$0xf]
          %v377 = vld [vmem:[#allocation12 + $0x34] sm:$0xf]
          %v378 = vld [vmem:[#allocation12 + $0x38] sm:$0xf]
          %v379 = vld [vmem:[#allocation12 + $0x3c] sm:$0xf]
          %v380 = vld [vmem:[%s5] sm:$0x1]
          %v382 = vlaneseq
          %v383 = vshrl.u32 %v382, 7
          %v384 = vsub.s32 0, %v383
          %v385 = vrot.slane %v380, %v384
          %v395 = vunpack.c.l.b16 %v353
          %v396 = vunpack.c.l.b16 %v354
          %v397 = vunpack.c.l.b16 %v355
          %v398 = vunpack.c.l.b16 %v356
          %v399 = vunpack.c.l.b16 %v357
          %v400 = vunpack.c.l.b16 %v358
          %v401 = vunpack.c.l.b16 %v359
          %v402 = vunpack.c.l.b16 %v360
          %v403 = vpack.c.b16 %v396, %v395
          %v404 = vpack.c.b16 %v398, %v397
          %v405 = vpack.c.b16 %v400, %v399
          %v406 = vpack.c.b16 %v402, %v401
          %v427 = vunpack.c.l.b16 %v364
          %v428 = vunpack.c.l.b16 %v365
          %v429 = vunpack.c.l.b16 %v366
          %v430 = vunpack.c.l.b16 %v367
          %v431 = vunpack.c.l.b16 %v368
          %v432 = vunpack.c.l.b16 %v369
          %v433 = vunpack.c.l.b16 %v370
          %v434 = vunpack.c.l.b16 %v371
          %v435 = vunpack.c.l.b16 %v372
          %v436 = vunpack.c.l.b16 %v373
          %v437 = vunpack.c.l.b16 %v374
          %v438 = vunpack.c.l.b16 %v375
          %v439 = vunpack.c.l.b16 %v376
          %v440 = vunpack.c.l.b16 %v377
          %v441 = vunpack.c.l.b16 %v378
          %v442 = vunpack.c.l.b16 %v379
          %v443 = vpack.c.b16 %v428, %v427
          %v444 = vpack.c.b16 %v430, %v429
          %v445 = vpack.c.b16 %v432, %v431
          %v446 = vpack.c.b16 %v434, %v433
          %v447 = vpack.c.b16 %v436, %v435
          %v448 = vpack.c.b16 %v438, %v437
          %v449 = vpack.c.b16 %v440, %v439
          %v450 = vpack.c.b16 %v442, %v441
          %459 = vmatprep.subr.bf16.mxu0 0
          %460 = vmatpush1.bf16.msra.mxu0 %v450
          %461 = vmatprep.subr.bf16.mxu0 0
          %462 = vmatpush1.bf16.msra.mxu0 %v449
          %463 = vmatprep.subr.bf16.mxu0 0
          %464 = vmatpush1.bf16.msra.mxu0 %v448
          %465 = vmatprep.subr.bf16.mxu0 0
          %466 = vmatpush1.bf16.msra.mxu0 %v447
          %467 = vmatprep.subr.bf16.mxu0 0
          %468 = vmatpush1.bf16.msra.mxu0 %v446
          %469 = vmatprep.subr.bf16.mxu0 0
          %470 = vmatpush1.bf16.msra.mxu0 %v445
          %471 = vmatprep.subr.bf16.mxu0 0
          %472 = vmatpush1.bf16.msra.mxu0 %v444
          %473 = vmatprep.subr.bf16.mxu0 0
          %474 = vmatpush1.bf16.msra.mxu0 %v443
          %475 = vmatprep.subr.bf16.mxu0 0
          %476 = vmatpush2.bf16.msra.mxu0 0
          %477 = vmatprep.subr.bf16.mxu0 0
          %478 = vmatpush2.bf16.msra.mxu0 0
          %479 = vmatprep.subr.bf16.mxu0 0
          %480 = vmatpush2.bf16.msra.mxu0 0
          %481 = vmatprep.subr.bf16.mxu0 0
          %482 = vmatpush2.bf16.msra.mxu0 0
          %483 = vmatprep.subr.bf16.mxu0 0
          %484 = vmatpush2.bf16.msra.mxu0 0
          %485 = vmatprep.subr.bf16.mxu0 0
          %486 = vmatpush2.bf16.msra.mxu0 0
          %487 = vmatprep.subr.bf16.mxu0 0
          %488 = vmatpush2.bf16.msra.mxu0 0
          %489 = vmatprep.subr.bf16.mxu0 0
          %490 = vmatpush2.bf16.msra.mxu0 0
          %491 = vmatprep.mubr.bf16.mxu0 0
          %492 = vmatmul.mubr.bf16.gmra.mxu0 %v403
          %v493 = vpop.f32.mrf.mxu0
          %v494 = vadd.f32 %v385, %v493
          %v495 = vpop.f32.mrf.mxu0
          %v496 = vpop.f32.mrf.mxu0
          %v497 = vadd.f32 %v385, %v496
          %v498 = vpop.f32.mrf.mxu0
          %499 = vmatprep.mubr.bf16.mxu0 0
          %500 = vmatmul.mubr.bf16.gmra.mxu0 %v404
          %v501 = vpop.f32.mrf.mxu0
          %v502 = vadd.f32 %v385, %v501
          %v503 = vpop.f32.mrf.mxu0
          %v504 = vpop.f32.mrf.mxu0
          %v505 = vadd.f32 %v385, %v504
          %v506 = vpop.f32.mrf.mxu0
          %507 = vmatprep.mubr.bf16.mxu0 0
          %508 = vmatmul.mubr.bf16.gmra.mxu0 %v405
          %v509 = vpop.f32.mrf.mxu0
          %v510 = vadd.f32 %v385, %v509
          %v511 = vpop.f32.mrf.mxu0
          %v512 = vpop.f32.mrf.mxu0
          %v513 = vadd.f32 %v385, %v512
          %v514 = vpop.f32.mrf.mxu0
          %515 = vmatprep.mubr.bf16.mxu0 0
          %516 = vmatmul.mubr.bf16.gmra.mxu0 %v406
          %v517 = vpop.f32.mrf.mxu0
          %v518 = vadd.f32 %v385, %v517
          %v519 = vpop.f32.mrf.mxu0
          %v520 = vpop.f32.mrf.mxu0
          %v521 = vadd.f32 %v385, %v520
          %v522 = vpop.f32.mrf.mxu0
          %523 = vdwg.mxu0
          %v524 = vunpack.c.l.bf16 %v361
          %v525 = vlaneseq
          %v526 = vshrl.u32 %v525, 7
          %v527 = vsub.s32 0, %v526
          %v528 = vrot.slane %v524, %v527
          %v529 = vadd.f32 %v494, %v528
          %v530 = vadd.f32 %v497, %v528
          %v531 = vadd.f32 %v502, %v528
          %v532 = vadd.f32 %v505, %v528
          %v533 = vadd.f32 %v510, %v528
          %v534 = vadd.f32 %v513, %v528
          %v535 = vadd.f32 %v518, %v528
          %v536 = vadd.f32 %v521, %v528
          %v537 = vmax.f32 %v529, 0.0
          %v538 = vmax.f32 %v530, 0.0
          %v539 = vmax.f32 %v531, 0.0
          %v540 = vmax.f32 %v532, 0.0
          %v541 = vmax.f32 %v533, 0.0
          %v542 = vmax.f32 %v534, 0.0
          %v543 = vmax.f32 %v535, 0.0
          %v544 = vmax.f32 %v536, 0.0
          %v545 = vpack.c.bf16 %v538, %v537
          %v546 = vpack.c.bf16 %v540, %v539
          %v547 = vpack.c.bf16 %v542, %v541
          %v548 = vpack.c.bf16 %v544, %v543
          %v549 = vlaneseq
          %v550 = vand.u32 %v549, 127
          %v551 = vstv %s348
          %v552 = vadd.s32 %v551, %v550
          %v553 = vstv %s336
          %vm554 = vcmp.lt.s32.totalorder %v552, %v553
          %v557 = vunpack.c.l.b16 %v362
          %v558 = vunpack.c.l.b16 %v363
          %v559 = vpack.c.b16 %v558, %v557
          %561 = vmatprep.subr.bf16.mxu0 0
          %562 = vmatpush1.bf16.xpose.msra.mxu0 0
          %563 = vmatprep.subr.bf16.mxu0 0
          %564 = vmatpush1.bf16.xpose.msra.mxu0 0
          %565 = vmatprep.subr.bf16.mxu0 0
          %566 = vmatpush1.bf16.xpose.msra.mxu0 0
          %567 = vmatprep.subr.bf16.mxu0 0
          %568 = vmatpush1.bf16.xpose.msra.mxu0 0
          %569 = vmatprep.subr.bf16.mxu0 0
          %570 = vmatpush1.bf16.xpose.msra.mxu0 %v548
          %571 = vmatprep.subr.bf16.mxu0 0
          %572 = vmatpush1.bf16.xpose.msra.mxu0 %v547
          %573 = vmatprep.subr.bf16.mxu0 0
          %574 = vmatpush1.bf16.xpose.msra.mxu0 %v546
          %575 = vmatprep.subr.bf16.mxu0 0
          %576 = vmatpush1.bf16.xpose.msra.mxu0 %v545
          %577 = vmatprep.subr.bf16.mxu0 0
          %578 = vmatpush2.bf16.xpose.msra.mxu0 0
          %579 = vmatprep.subr.bf16.mxu0 0
          %580 = vmatpush2.bf16.xpose.msra.mxu0 0
          %581 = vmatprep.subr.bf16.mxu0 0
          %582 = vmatpush2.bf16.xpose.msra.mxu0 0
          %583 = vmatprep.subr.bf16.mxu0 0
          %584 = vmatpush2.bf16.xpose.msra.mxu0 0
          %585 = vmatprep.subr.bf16.mxu0 0
          %586 = vmatpush2.bf16.xpose.msra.mxu0 0
          %587 = vmatprep.subr.bf16.mxu0 0
          %588 = vmatpush2.bf16.xpose.msra.mxu0 0
          %589 = vmatprep.subr.bf16.mxu0 0
          %590 = vmatpush2.bf16.xpose.msra.mxu0 0
          %591 = vmatprep.subr.bf16.mxu0 0
          %592 = vmatpush2.bf16.xpose.msra.mxu0 0
          %593 = vmatprep.mubr.bf16.mxu0 0
          %594 = vmatmul.mubr.bf16.gmra.mxu0 %v559
          %v595 = vpop.f32.mrf.mxu0
          %v596 = vadd.f32 0.0, %v595
          %v597 = vpop.f32.mrf.mxu0
          %v598 = vpop.f32.mrf.mxu0
          %v599 = vadd.f32 0.0, %v598
          %v600 = vpop.f32.mrf.mxu0
          %601 = vdwg.mxu0
          %v602 = vmul.f32 %v596, 0.088388346
          %v603 = vmul.f32 %v599, 0.088388346
          %v604 = vsel %vm554, 1, 0
          %vm605 = vcmp.eq.s32.totalorder %v604, 1
          %v606 = vsel %vm605, %v602, -1e+30
          %v607 = vsel %vm605, %v603, -1e+30
          %v608 = vld [vmem:[#allocation2] sm:$0xff]
          %v609 = vld [vmem:[#allocation2 + $0x8] sm:$0xff]
          %vm610 = vcmask 523264
          %v611 = vsel %vm610, %v606, -inf
          %612 = vmax.xlane.f32.xlu0 %v611
          %v613 = vpop.xlane.xlu0 %612
          %v614 = vsel %vm610, %v607, -inf
          %615 = vmax.xlane.f32.xlu0 %v614
          %v616 = vpop.xlane.xlu0 %615
          %v617 = vmax.f32 %v608, %v613
          %v618 = vmax.f32 %v609, %v616
          %v619 = vsub.f32 %v608, %v617
          %v620 = vsub.f32 %v609, %v618
          %v621 = vmul.f32 %v619, 1.442695
          %v622 = vpow.pop %v621
          %v623 = vmul.f32 %v620, 1.442695
          %v624 = vpow.pop %v623
          %626 = vset.pattern.permute.xlu0 0
          %627 = vperm.xlu0 %626, %v617
          %v628 = vpop.permute.xlu0 %627
          %631 = vset.pattern.permute.xlu0 0
          %632 = vperm.xlu0 %631, %v618
          %v633 = vpop.permute.xlu0 %632
          %v635 = vsub.f32 %v606, %v628
          %v636 = vsub.f32 %v607, %v633
          %v637 = vmul.f32 %v635, 1.442695
          %v638 = vpow.pop %v637
          %v639 = vmul.f32 %v636, 1.442695
          %v640 = vpow.pop %v639
          %v641 = vld [vmem:[#allocation3] sm:$0xff]
          %v642 = vld [vmem:[#allocation3 + $0x8] sm:$0xff]
          %v643 = vmul.f32 %v622, %v641
          %v644 = vmul.f32 %v624, %v642
          %v645 = vsel %vm610, %v638, 0.0
          %646 = vadd.xlane.f32.xlu0 %v645
          %v647 = vpop.xlane.xlu0 %646
          %v648 = vsel %vm610, %v640, 0.0
          %649 = vadd.xlane.f32.xlu0 %v648
          %v650 = vpop.xlane.xlu0 %649
          %v651 = vadd.f32 %v643, %v647
          %v652 = vadd.f32 %v644, %v650
          %vm653 = vcmask 7168
          %654 = vst.msk [vmem:[#allocation3] sm:$0xff] %vm653, %v651
          %655 = vst.msk [vmem:[#allocation3 + $0x8] sm:$0xff] %vm653, %v652
          %v656 = vld [vmem:[#allocation4] sm:$0xff]
          %v657 = vld [vmem:[#allocation4 + $0x8] sm:$0xff]
          %659 = vset.pattern.permute.xlu0 0
          %660 = vperm.xlu0 %659, %v622
          %v661 = vpop.permute.xlu0 %660
          %664 = vset.pattern.permute.xlu0 0
          %665 = vperm.xlu0 %664, %v624
          %v666 = vpop.permute.xlu0 %665
          %v668 = vmul.f32 %v661, %v656
          %v669 = vmul.f32 %v666, %v657
          %v670 = vpack.c.bf16 %v640, %v638
          %v672 = vsel %vm610, %v670, 0
          %674 = vmatprep.subr.bf16.mxu0 0
          %675 = vmatpush1.bf16.msra.mxu0 0
          %676 = vmatprep.subr.bf16.mxu0 0
          %677 = vmatpush1.bf16.msra.mxu0 0
          %678 = vmatprep.subr.bf16.mxu0 0
          %679 = vmatpush1.bf16.msra.mxu0 0
          %680 = vmatprep.subr.bf16.mxu0 0
          %681 = vmatpush1.bf16.msra.mxu0 0
          %682 = vmatprep.subr.bf16.mxu0 0
          %683 = vmatpush1.bf16.msra.mxu0 %v548
          %684 = vmatprep.subr.bf16.mxu0 0
          %685 = vmatpush1.bf16.msra.mxu0 %v547
          %686 = vmatprep.subr.bf16.mxu0 0
          %687 = vmatpush1.bf16.msra.mxu0 %v546
          %688 = vmatprep.subr.bf16.mxu0 0
          %689 = vmatpush1.bf16.msra.mxu0 %v545
          %690 = vmatprep.subr.bf16.mxu0 0
          %691 = vmatpush2.bf16.msra.mxu0 0
          %692 = vmatprep.subr.bf16.mxu0 0
          %693 = vmatpush2.bf16.msra.mxu0 0
          %694 = vmatprep.subr.bf16.mxu0 0
          %695 = vmatpush2.bf16.msra.mxu0 0
          %696 = vmatprep.subr.bf16.mxu0 0
          %697 = vmatpush2.bf16.msra.mxu0 0
          %698 = vmatprep.subr.bf16.mxu0 0
          %699 = vmatpush2.bf16.msra.mxu0 0
          %700 = vmatprep.subr.bf16.mxu0 0
          %701 = vmatpush2.bf16.msra.mxu0 0
          %702 = vmatprep.subr.bf16.mxu0 0
          %703 = vmatpush2.bf16.msra.mxu0 0
          %704 = vmatprep.subr.bf16.mxu0 0
          %705 = vmatpush2.bf16.msra.mxu0 0
          %706 = vmatprep.mubr.bf16.mxu0 0
          %707 = vmatmul.mubr.bf16.gmra.mxu0 %v672
          %v708 = vpop.f32.mrf.mxu0
          %v709 = vadd.f32 0.0, %v708
          %v710 = vpop.f32.mrf.mxu0
          %v711 = vpop.f32.mrf.mxu0
          %v712 = vadd.f32 0.0, %v711
          %v713 = vpop.f32.mrf.mxu0
          %714 = vdwg.mxu0
          %v715 = vadd.f32 %v668, %v709
          %v716 = vadd.f32 %v669, %v712
          %717 = vst [vmem:[#allocation4] sm:$0xff] %v715
          %718 = vst [vmem:[#allocation4 + $0x8] sm:$0xff] %v716
          %719 = vst.msk [vmem:[#allocation2] sm:$0xff] %vm653, %v617
          %720 = vst.msk [vmem:[#allocation2 + $0x8] sm:$0xff] %vm653, %v618
        $region60: #{tpu_custom_call.1} parent=39 // pred_fallthru
          _
        // Predicated region
        $region61: #{tpu_custom_call.1} parent=39 // pred_check
          %p721 = pneg %p337
        $region62: #{tpu_custom_call.1} parent=39 // pred_check_branch
          %723 = sbr.rel (%p721) target = $region64
        $region63: #{tpu_custom_call.1} parent=39 // pred_region
          %v724 = vld [vmem:[%s292] sm:$0xf]
          %v725 = vld [vmem:[%s292 + $0x4] sm:$0xf]
          %v726 = vld [vmem:[#allocation3] sm:$0xff]
          %v727 = vld [vmem:[#allocation3 + $0x8] sm:$0xff]
          %v728 = vmax.f32 %v726, 1e-30
          %v729 = vmax.f32 %v727, 1e-30
          %v730 = vrcp.pop %v728
          %v731 = vrcp.pop %v729
          %v732 = vunpack.c.l.bf16 %v724
          %v733 = vunpack.c.l.bf16 %v725
          %v734 = vld [vmem:[#allocation4] sm:$0xff]
          %v735 = vld [vmem:[#allocation4 + $0x8] sm:$0xff]
          %737 = vset.pattern.permute.xlu0 0
          %738 = vperm.xlu0 %737, %v730
          %v739 = vpop.permute.xlu0 %738
          %742 = vset.pattern.permute.xlu0 0
          %743 = vperm.xlu0 %742, %v731
          %v744 = vpop.permute.xlu0 %743
          %v746 = vmul.f32 %v734, %v739
          %v747 = vmul.f32 %v735, %v744
          %v748 = vadd.f32 %v732, %v746
          %v749 = vadd.f32 %v733, %v747
          %v750 = vpack.c.bf16 %v749, %v748
          %v752 = vunpack.c.l.b16 %v750
          %v753 = vunpack.c.h.b16 %v750
          %v754 = vpack.c.b16 %v752, %v752
          %v755 = vpack.c.b16 %v753, %v753
          %758 = vst [vmem:[%s330] sm:$0xf] %v754
          %759 = vst [vmem:[%s330 + $0x4] sm:$0xf] %v755
        $region64: #{tpu_custom_call.1} parent=39 // pred_fallthru
          _
        %s760 = sand.u32 %s174, 1
        %s761 = scalar_lea.sflag [#allocation9], %s760
        %s762 = sand.u32 %s174, 1
        %s763 = smul.addr %s762, 8
        %s764 = scalar_lea.vmem [#allocation13], %s763
        // Predicated region
        $region65: #{tpu_custom_call.1} parent=39 // pred_check
          %p765 = pneg %p184
        $region66: #{tpu_custom_call.1} parent=39 // pred_check_branch
          %767 = sbr.rel (%p765) target = $region68
        $region67: #{tpu_custom_call.1} parent=39 // pred_region
          %s769 = ssub.s32 128, 128
          %770 = vsyncadd %s761, %s769
          %s771 = smul.addr %s36, 2
          %s772 = smul.addr %s771, 64
          %s773 = scalar_lea.hbm %s6, %s772
          %s774 = sshll.u32 %s764, 4
          %s775 = int_to_ptr.vmem [resolvable:$true] %s774
          %780 = dma.vmem_to_hbm [thread:$0]  %s775, 128, %s773, %s761, 64, 64, 4
        $region68: #{tpu_custom_call.1} parent=39 // pred_fallthru
          _
      $region40: #{tpu_custom_call.1} parent=5 // pred_fallthru
        _
      %p781 = scmp.le.s32.totalorder 2, %s27
      // Predicated region
      $region69: #{tpu_custom_call.1} parent=5 // pred_check
        %p782 = pneg %p781
      $region70: #{tpu_custom_call.1} parent=5 // pred_check_branch
        %784 = sbr.rel (%p782) target = $region72
      $region71: #{tpu_custom_call.1} parent=5 // pred_region
        %s785 = ssub.s32 %s27, 2
        // Predicated region
        $region73: #{tpu_custom_call.1} parent=71 // pred_check
          %p786 = pneg %p190
        $region74: #{tpu_custom_call.1} parent=71 // pred_check_branch
          %788 = sbr.rel (%p786) target = $region76
        $region75: #{tpu_custom_call.1} parent=71 // pred_region
          %s789 = sand.u32 %s175, 1
          %s790 = scalar_lea.sflag [#allocation9], %s789
          %s791 = sand.u32 %s175, 1
          %s792 = smul.addr %s791, 8
          %s793 = scalar_lea.vmem [#allocation13], %s792
          %794 = dma.done %s790, 128
        $region76: #{tpu_custom_call.1} parent=71 // pred_fallthru
          _
      $region72: #{tpu_custom_call.1} parent=5 // pred_fallthru
        _
    $region6: #{tpu_custom_call.1} parent=1 // loop_footer
      %s31 = sadd.s32 1, %s27
    $region7: #{tpu_custom_call.1} parent=1 // loop_footer_branch
      %26 = sbr.rel target = $region3
    $region8: #{tpu_custom_call.1} parent=1 // loop_exit
      _
    %795 = vsyncpa [#allocation8], 1
    %s796 = scalar_lea.sflag [#allocation8], 1
    %797 = vsyncpa %s796, 1
    %798 = vsyncpa [#allocation11], 1
    %s799 = scalar_lea.sflag [#allocation11], 1
    %800 = vsyncpa %s799, 1
    %801 = vsyncpa [#allocation9], 1
    %s802 = scalar_lea.sflag [#allocation9], 1
    %803 = vsyncpa %s802, 1

</llo_original>
